<compile_context>
chip_gen: v7x
topology: tpu7x:2x2x1
jax: 0.10.0
libtpu: 0.0.40
codegen_flags: <defaults>
</compile_context>

<pallas_src>
import jax
import jax.numpy as jnp
import numpy as np
from jax.experimental import pallas as pl
from jax.experimental.pallas import tpu as pltpu


def _round_up(v, m):
    return (v + m - 1) // m * m


def _pick_tile(dim_p, pref):
    """Largest multiple-of-128 tile <= max(pref, 128) that divides dim_p.

    dim_p must be a multiple of 128, so this never underflows below 128.
    """
    pref = max(128, _round_up(pref, 128))
    t = min(pref, dim_p)
    while dim_p % t:
        t -= 128
    return t


# Full-K RHS blocks smaller than this (bytes) are kept fully VMEM-resident so
# the intermediate h is DMA'd from HBM exactly once (not once per row tile).
_RESIDENT_RHS_CAP = 6 * 1024 * 1024


def _make_mm_kernel(tk, rhs_resident, use_scratch):
    """Tiled matmul body: out[i,j] = sum_k A[i,k] @ B[k,j].

    rhs_resident: B block holds the full reduction axis; slice tk rows in-kernel.
    use_scratch : accumulate in an f32 VMEM scratch and cast on the final k step
                  (used when the output dtype is bf16); otherwise accumulate
                  directly into o_ref (f32 output, no scratch, no copy pass).
    """

    def kernel(a_ref, b_ref, o_ref, *scratch):
        k = pl.program_id(2)
        acc = scratch[0] if use_scratch else o_ref

        @pl.when(k == 0)
        def _init():
            acc[...] = jnp.zeros_like(acc)

        # LHS -> bf16: exact for the 0/1 int8 adjacency; default-precision f32
        # matmul truncates to bf16 inside the MXU anyway, so no numeric change.
        a = a_ref[...].astype(jnp.bfloat16)

        if rhs_resident:
            off = pl.multiple_of(k * tk, 128)
            b = b_ref[pl.ds(off, tk), :]
        else:
            b = b_ref[...]

        acc[...] += jnp.dot(a, b.astype(jnp.bfloat16),
                            preferred_element_type=jnp.float32)

        if use_scratch:
            @pl.when(k == pl.num_programs(2) - 1)
            def _store():
                o_ref[...] = acc[...].astype(o_ref.dtype)

    return kernel


def _tiled_matmul(a, b, *, tm, tn, tk, out_dtype=jnp.float32):
    M, K = a.shape
    K2, N = b.shape
    assert K == K2 and M % tm == 0 and N % tn == 0 and K % tk == 0
    grid = (M // tm, N // tn, K // tk)

    rhs_resident = (K * tn * b.dtype.itemsize) <= _RESIDENT_RHS_CAP
    if rhs_resident:
        # Constant block index across i and k -> Pallas DMAs B once per j tile.
        b_spec = pl.BlockSpec((K, tn), lambda i, j, k: (0, j))
    else:
        b_spec = pl.BlockSpec((tk, tn), lambda i, j, k: (k, j))

    use_scratch = jnp.dtype(out_dtype) != jnp.dtype(jnp.float32)
    scratch = [pltpu.VMEM((tm, tn), jnp.float32)] if use_scratch else []

    return pl.pallas_call(
        _make_mm_kernel(tk, rhs_resident, use_scratch),
        out_shape=jax.ShapeDtypeStruct((M, N), out_dtype),
        grid_spec=pltpu.PrefetchScalarGridSpec(
            num_scalar_prefetch=0,
            grid=grid,
            in_specs=[pl.BlockSpec((tm, tk), lambda i, j, k: (i, k)), b_spec],
            out_specs=pl.BlockSpec((tm, tn), lambda i, j, k: (i, j)),
            scratch_shapes=scratch,
        ),
        compiler_params=pltpu.CompilerParams(
            dimension_semantics=("parallel", "parallel", "arbitrary"),
            vmem_limit_bytes=64 * 1024 * 1024,
        ),
    )(a, b)


def sparse_graph_conv_forward(x, adj, weight, *,
                              tile_rows=256, tile_cols=512, tile_k=256):
    """Pallas implementation of SparseGraphConvolutionLayer.forward (eval mode).

    x      : (N, F_in)   float32 node features
    adj    : (N, N)      adjacency; any nonzero entry is an edge (edge value -> 1)
    weight : (F_in, F_out)
    """
    N, f_in = x.shape
    f_in_w, f_out = weight.shape
    assert f_in_w == f_in

    f_in_p = _round_up(f_in, 128)
    f_out_p = _round_up(f_out, 128)
    # Fixed 256-multiple node padding, decoupled from the tile size, so growing
    # tm/tk does not quadratically inflate the zero-padded adjacency.
    n_p = _round_up(N, 256)

    tm = _pick_tile(n_p, tile_rows)
    tk_n = _pick_tile(n_p, tile_k)
    tk_f = _pick_tile(f_in_p, tile_k)

    def col_tile(dim_p):
        # Single j tile when the padded column dim is small -> the O(N^2)
        # adjacency operand is streamed from HBM exactly once.
        return dim_p if dim_p <= 512 else _pick_tile(dim_p, tile_cols)

    # Zero-padded, lane-dense operands (padding rows/cols contribute 0).
    x_p = jnp.zeros((n_p, f_in_p), jnp.float32).at[:N, :f_in].set(
        x.astype(jnp.float32))
    w_p = jnp.zeros((f_in_p, f_out_p), jnp.bfloat16).at[:f_in, :f_out].set(
        weight.astype(jnp.bfloat16))
    # edge_v == ones: binarize the adjacency; ship as int8 (4x less HBM than f32).
    # TODO(synk): if the same graph is reused across layers/steps, cache this
    # padded int8 adjacency outside the forward instead of rebuilding it here.
    adj_p = jnp.zeros((n_p, n_p), jnp.int8).at[:N, :N].set(
        (adj != 0).astype(jnp.int8))

    if f_out <= f_in:
        # h = x @ W  (bf16 intermediate), then out = A_bin @ h.
        h = _tiled_matmul(x_p, w_p, tm=tm, tn=col_tile(f_out_p), tk=tk_f,
                          out_dtype=jnp.bfloat16)
        out = _tiled_matmul(adj_p, h, tm=tm, tn=col_tile(f_out_p), tk=tk_n,
                            out_dtype=jnp.float32)
    else:
        # Reassociate to minimize the O(N^2 * d) term: (A_bin @ x) @ W.
        agg = _tiled_matmul(adj_p, x_p, tm=tm, tn=col_tile(f_in_p), tk=tk_n,
                            out_dtype=jnp.bfloat16)
        out = _tiled_matmul(agg, w_p, tm=tm, tn=col_tile(f_out_p), tk=tk_f,
                            out_dtype=jnp.float32)

    # TODO(synk): nn.Dropout on the output is identity in eval mode; training-mode
    # dropout would need pltpu.prng_seed / prng_random_bits.
    return out[:N, :f_out]


def sparse_graph_conv_reference(x, adj, weight):
    """Pure-JAX reference mirroring the PyTorch forward (eval mode)."""
    h = jnp.dot(x, weight)
    a_bin = (adj != 0).astype(jnp.float32)
    return jnp.dot(a_bin, h)


if __name__ == "__main__":
    key = jax.random.PRNGKey(0)
    keys = jax.random.split(key, 6)

    def run_case(N, f_in, f_out, k_x, k_adj, k_w, **tiles):
        # Integer-valued data => every product/sum is exactly representable on
        # any MXU precision path (and in the bf16 intermediate), so the
        # kernel-vs-reference check is precision-agnostic.
        x = jnp.round(jax.random.normal(k_x, (N, f_in)) * 2.0).astype(jnp.float32)
        # Sparse adjacency with NON-unit nonzeros, exercising the edge_v = ones
        # binarization semantics of the torch module.
        u = jax.random.uniform(k_adj, (N, N))
        adj = jnp.where(u > 0.65, u + 0.5, 0.0).astype(jnp.float32)
        w = jax.random.randint(k_w, (f_in, f_out), -1, 2).astype(jnp.float32)

        out = jax.block_until_ready(sparse_graph_conv_forward(x, adj, w, **tiles))
        ref = sparse_graph_conv_reference(x, adj, w)
        np.testing.assert_allclose(np.asarray(out), np.asarray(ref),
                                   rtol=1e-3, atol=1e-2)

    # f_out <= f_in: standard ordering. Small tiles so the toy shape still
    # exercises multi-row-tile output and the K-axis accumulation path
    # (N=200 pads to 256 -> 2 row tiles, 2 reduction tiles in stage 2).
    run_case(200, 96, 48, keys[0], keys[1], keys[2],
             tile_rows=128, tile_cols=128, tile_k=128)
    # f_out > f_in: exercises the reassociated (A_bin @ x) @ W ordering.
    run_case(200, 32, 96, keys[3], keys[4], keys[5],
             tile_rows=256, tile_cols=256, tile_k=256)

    print("KERNEL_OK")
</pallas_src>

<mosaic_0001>
module attributes {stable_mosaic.version = 11 : i64} {
  func.func @kernel(%arg0: i32, %arg1: i32, %arg2: i32, %arg3: memref<128x128xf32, #tpu.memory_space<vmem>>, %arg4: memref<128x128xbf16, #tpu.memory_space<vmem>>, %arg5: memref<128x128xbf16, #tpu.memory_space<vmem>>, %arg6: memref<128x128xf32, #tpu.memory_space<vmem>>) attributes {dimension_semantics = [#tpu.dimension_semantics<parallel>, #tpu.dimension_semantics<parallel>, #tpu.dimension_semantics<arbitrary>], iteration_bounds = array<i64: 2, 1, 1>, scalar_prefetch = 0 : i64, scratch_operands = 1 : i64, tpu.core_type = #tpu.core_type<tc>, window_params = [{transform_indices = @transform_0, window_bounds = array<i64: 128, 128>}, {transform_indices = @transform_1, window_bounds = array<i64: 128, 128>}, {transform_indices = @transform_2, window_bounds = array<i64: 128, 128>}]} {
    %c0_i32 = arith.constant 0 : i32
    %0 = arith.cmpi eq, %arg2, %c0_i32 : i32
    %1 = arith.extui %0 : i1 to i32
    %c0_i32_0 = arith.constant 0 : i32
    %2 = arith.cmpi ne, %1, %c0_i32_0 : i32
    scf.if %2 {
      %cst_9 = arith.constant 0.000000e+00 : f32
      %16 = vector.broadcast %cst_9 : f32 to vector<128x128xf32>
      %c0_10 = arith.constant 0 : index
      %c0_11 = arith.constant 0 : index
      %17 = vector.load %arg6[%c0_10, %c0_11] : memref<128x128xf32, #tpu.memory_space<vmem>>, vector<128x128xf32>
      tpu.vector_store %arg6[%c0_10, %c0_11], %16 {strides = array<i32>} : memref<128x128xf32, #tpu.memory_space<vmem>>, vector<128x128xf32>,
    } else {
    }
    %c0 = arith.constant 0 : index
    %c0_1 = arith.constant 0 : index
    %3 = vector.load %arg3[%c0, %c0_1] : memref<128x128xf32, #tpu.memory_space<vmem>>, vector<128x128xf32>
    %4 = arith.truncf %3 : vector<128x128xf32> to vector<128x128xbf16>
    %c128_i32 = arith.constant 128 : i32
    %5 = arith.muli %arg2, %c128_i32 : i32
    %6 = tpu.assume_multiple %5, 128 : i32
    %7 = arith.index_cast %6 : i32 to index
    %c0_2 = arith.constant 0 : index
    %8 = vector.load %arg4[%7, %c0_2] : memref<128x128xbf16, #tpu.memory_space<vmem>>, vector<128x128xbf16>
    %c0_3 = arith.constant 0 : index
    %c0_4 = arith.constant 0 : index
    %9 = vector.load %arg6[%c0_3, %c0_4] : memref<128x128xf32, #tpu.memory_space<vmem>>, vector<128x128xf32>
    %cst = arith.constant dense<0.000000e+00> : vector<128x128xf32>
    %10 = tpu.matmul %4, %8, %cst {dimension_numbers = #tpu.dot_dimension_numbers<[1], [0], [0], [1], [0, 0, 1, 1], [], []>} : vector<128x128xbf16>, vector<128x128xbf16>, vector<128x128xf32> -> vector<128x128xf32>
    %11 = arith.addf %9, %10 : vector<128x128xf32>
    %c0_5 = arith.constant 0 : index
    %c0_6 = arith.constant 0 : index
    %12 = vector.load %arg6[%c0_5, %c0_6] : memref<128x128xf32, #tpu.memory_space<vmem>>, vector<128x128xf32>
    tpu.vector_store %arg6[%c0_5, %c0_6], %11 {strides = array<i32>} : memref<128x128xf32, #tpu.memory_space<vmem>>, vector<128x128xf32>,
    %c0_i32_7 = arith.constant 0 : i32
    %13 = arith.cmpi eq, %arg2, %c0_i32_7 : i32
    %14 = arith.extui %13 : i1 to i32
    %c0_i32_8 = arith.constant 0 : i32
    %15 = arith.cmpi ne, %14, %c0_i32_8 : i32
    scf.if %15 {
      %c0_9 = arith.constant 0 : index
      %c0_10 = arith.constant 0 : index
      %16 = vector.load %arg6[%c0_9, %c0_10] : memref<128x128xf32, #tpu.memory_space<vmem>>, vector<128x128xf32>
      %17 = arith.truncf %16 : vector<128x128xf32> to vector<128x128xbf16>
      %c0_11 = arith.constant 0 : index
      %c0_12 = arith.constant 0 : index
      %18 = vector.load %arg5[%c0_11, %c0_12] : memref<128x128xbf16, #tpu.memory_space<vmem>>, vector<128x128xbf16>
      tpu.vector_store %arg5[%c0_11, %c0_12], %17 {strides = array<i32>} : memref<128x128xbf16, #tpu.memory_space<vmem>>, vector<128x128xbf16>,
    } else {
    }
    return
  }
  func.func @transform_0(%arg0: i32, %arg1: i32, %arg2: i32) -> (i32, i32) {
    %c0_i32 = arith.constant 0 : i32
    return %arg0, %arg2 : i32, i32
  }
  func.func @transform_1(%arg0: i32, %arg1: i32, %arg2: i32) -> (i32, i32) {
    %c0_i32 = arith.constant 0 : i32
    %c0_i32_0 = arith.constant 0 : i32
    return %c0_i32, %arg1 : i32, i32
  }
  func.func @transform_2(%arg0: i32, %arg1: i32, %arg2: i32) -> (i32, i32) {
    %c0_i32 = arith.constant 0 : i32
    return %arg0, %arg1 : i32, i32
  }
}

</mosaic_0001>

<llo_original>
// kernel: tpu_custom_call.1
$region0: #{tpu_custom_call.1}
  #allocation0 [shape = 'u32[]', space=smem, size = 0x4, offset = 0x4, fixed_abs, tag = 'smem constant byte address 0x4 - core index']
  #allocation1 [shape = 'u32[144,128]{1,0:T(1,128)}', space=vmem, size = 0x12000, scoped, tag = 'internal scratch']
  #allocation2 [shape = 'f32[128,128]{1,0:T(8,128)}', space=vmem, size = 0x10000, scoped, tag = 'scratch operand']
  %s0 = inlined_call_operand.hbm [shape: f32[256,128], index: 0, kind: input, shape index: {}]
  %s1 = inlined_call_operand.hbm [shape: bf16[128,128], index: 1, kind: input, shape index: {}]
  %s2 = inlined_call_operand.hbm [shape: bf16[256,128], index: 2, kind: output, shape index: {}]
  %s3 = sld [smem:[#allocation0]]
  $region57: #{tpu_custom_call.1} parent=0
    _
  %s5 = ssub.s32 1, %s3
  %s6 = scalar_select 0, %s5, %s3
  $region1: #{tpu_custom_call.1} parent=0
    #allocation3 [shape = 'u8[131072]{0}', space=vmem, size = 0x20000, scoped, tag = 'input window, operand 0']
    #allocation4 [shape = 's32[2]{0}', space=sflag, size = 0x8, scoped, tag = 'scoped memory for tpu_custom_call.1']
    #allocation5 [shape = 's32[2]{0}', space=sflag, size = 0x8, scoped, tag = 'scoped memory for tpu_custom_call.1']
    #allocation6 [shape = 'u8[32768]{0}', space=vmem, size = 0x8000, scoped, tag = 'input window, operand 1, single buffered']
    #allocation7 [shape = 's32[1]{0}', space=sflag, size = 0x4, scoped, tag = 'scoped memory for tpu_custom_call.1']
    #allocation8 [shape = 'u8[65536]{0}', space=vmem, size = 0x10000, scoped, tag = 'output window, operand 0']
    %7 = vsyncpa [#allocation4], 0
    %s8 = scalar_lea.sflag [#allocation4], 1
    %9 = vsyncpa %s8, 0
    %10 = vsyncpa [#allocation7], 0
    %11 = vsyncpa [#allocation5], 0
    %s12 = scalar_lea.sflag [#allocation5], 1
    %13 = vsyncpa %s12, 0
    loop: start=0, step=1, limit=4
    $region2: #{tpu_custom_call.1} parent=1 // loop_pre_header
      _
    $region3: #{tpu_custom_call.1} parent=1 // loop_header
      %s15 = sphi 0, %s19
      %p16 = scmp.ge.s32.totalorder %s15, 4
      %s22 = sphi 0, %s41
      %s23 = sphi 0, %s37
      %s24 = sphi 0, %s33
      %s25 = sphi 0, %s22
      %s26 = sphi 0, %s23
      %s27 = sphi 0, %s24
      %s28 = sphi 0, %s25
      %s29 = sphi 0, %s26
      %s30 = sphi 0, %s27
      %s46 = sphi 0, %s48
      %s49 = sphi 0, %s46
      %s50 = sphi 0, %s49
      %s66 = sphi 0, %s50
      %s72 = sphi 0, %s74
      %s75 = sphi 0, %s72
      %s76 = sphi 0, %s75
      %s92 = sphi 0, %s76
      %s100 = sphi 0, %s102
      %s103 = sphi 0, %s100
      %s104 = sphi 0, %s103
      %s120 = sphi 0, %s104
    $region4: #{tpu_custom_call.1} parent=1 // loop_header_branch
      %18 = sbr.rel (%p16) target = $region8
    $region5: #{tpu_custom_call.1} parent=1 // loop_body
      %s20 = ssub.s32 %s15, 1
      %s21 = ssub.s32 %s15, 2
      %s31 = sadd.s32 1, %s24
      %p32 = scmp.ge.s32.totalorder %s31, 1
      %s33 = scalar_select %p32, 0, %s31
      %s34 = sadd.s32 1, %s23
      %s35 = scalar_select %p32, %s34, %s23
      %p36 = scmp.ge.s32.totalorder %s35, 1
      %s37 = scalar_select %p36, 0, %s35
      %s38 = sadd.s32 1, %s22
      %s39 = scalar_select %p36, %s38, %s22
      %p40 = scmp.ge.s32.totalorder %s39, 2
      %s41 = scalar_select %p40, 0, %s39
      %s42 = ssub.s32 %s22, %s41
      %s43 = ssub.s32 %s24, %s33
      %s44 = sor.u32 %s42, %s43
      %p45 = scmp.eq.s32.totalorder %s44, 0
      %s47 = sadd.s32 %s46, 1
      %s48 = scalar_select %p45, %s46, %s47
      %p51 = pneg %p45
      %p52 = scmp.eq.s32.totalorder %s15, 1
      %p53 = por %p51, %p52
      %p54 = scmp.ne.s32.totalorder %s46, %s49
      %p55 = scmp.eq.s32.totalorder %s15, 0
      %p56 = por %p54, %p55
      %p57 = scmp.ne.s32.totalorder %s46, %s49
      %p58 = scmp.eq.s32.totalorder %s20, 1
      %p59 = por %p57, %p58
      %p60 = scmp.ne.s32.totalorder %s49, %s50
      %p61 = scmp.eq.s32.totalorder %s20, 0
      %p62 = por %p60, %p61
      %p63 = scmp.ne.s32.totalorder %s49, %s50
      %p64 = scmp.eq.s32.totalorder %s21, 1
      %p65 = por %p63, %p64
      %p67 = scmp.ne.s32.totalorder %s50, %s66
      %p68 = scmp.eq.s32.totalorder %s21, 0
      %p69 = por %p67, %p68
      %s70 = ssub.s32 %s23, %s37
      %p71 = scmp.eq.s32.totalorder %s70, 0
      %s73 = sadd.s32 %s72, 1
      %s74 = scalar_select %p71, %s72, %s73
      %p77 = pneg %p71
      %p78 = scmp.eq.s32.totalorder %s15, 1
      %p79 = por %p77, %p78
      %p80 = scmp.ne.s32.totalorder %s72, %s75
      %p81 = scmp.eq.s32.totalorder %s15, 0
      %p82 = por %p80, %p81
      %p83 = scmp.ne.s32.totalorder %s72, %s75
      %p84 = scmp.eq.s32.totalorder %s20, 1
      %p85 = por %p83, %p84
      %p86 = scmp.ne.s32.totalorder %s75, %s76
      %p87 = scmp.eq.s32.totalorder %s20, 0
      %p88 = por %p86, %p87
      %p89 = scmp.ne.s32.totalorder %s75, %s76
      %p90 = scmp.eq.s32.totalorder %s21, 1
      %p91 = por %p89, %p90
      %p93 = scmp.ne.s32.totalorder %s76, %s92
      %p94 = scmp.eq.s32.totalorder %s21, 0
      %p95 = por %p93, %p94
      %s96 = ssub.s32 %s22, %s41
      %s97 = ssub.s32 %s23, %s37
      %s98 = sor.u32 %s96, %s97
      %p99 = scmp.eq.s32.totalorder %s98, 0
      %s101 = sadd.s32 %s100, 1
      %s102 = scalar_select %p99, %s100, %s101
      %p105 = pneg %p99
      %p106 = scmp.eq.s32.totalorder %s15, 1
      %p107 = por %p105, %p106
      %p108 = scmp.ne.s32.totalorder %s100, %s103
      %p109 = scmp.eq.s32.totalorder %s15, 0
      %p110 = por %p108, %p109
      %p111 = scmp.ne.s32.totalorder %s100, %s103
      %p112 = scmp.eq.s32.totalorder %s20, 1
      %p113 = por %p111, %p112
      %p114 = scmp.ne.s32.totalorder %s103, %s104
      %p115 = scmp.eq.s32.totalorder %s20, 0
      %p116 = por %p114, %p115
      %p117 = scmp.ne.s32.totalorder %s103, %s104
      %p118 = scmp.eq.s32.totalorder %s21, 1
      %p119 = por %p117, %p118
      %p121 = scmp.ne.s32.totalorder %s104, %s120
      %p122 = scmp.eq.s32.totalorder %s21, 0
      %p123 = por %p121, %p122
      %p124 = scmp.le.s32.totalorder 1, %s15
      %p125 = scmp.lt.s32.totalorder %s15, 3
      %p126 = pnand %p124, %p125
      %p127 = pneg %p126
      // Predicated region
      $region9: #{tpu_custom_call.1} parent=5 // pred_check
        _
      $region10: #{tpu_custom_call.1} parent=5 // pred_check_branch
        %129 = sbr.rel (%p126) target = $region12
      $region11: #{tpu_custom_call.1} parent=5 // pred_region
        %s130 = ssub.s32 %s15, 1
        // Predicated region
        $region13: #{tpu_custom_call.1} parent=11 // pred_check
          %p131 = pneg %p88
        $region14: #{tpu_custom_call.1} parent=11 // pred_check_branch
          %133 = sbr.rel (%p131) target = $region16
        $region15: #{tpu_custom_call.1} parent=11 // pred_region
          %s135 = ssub.s32 1024, 1024
          %136 = vsyncadd [#allocation7], %s135
          %s137 = smul.addr %s26, 64
          %s138 = scalar_lea.hbm %s1, %s137
          %s139 = sshll.u32 [#allocation6], 4
          %s140 = int_to_ptr.vmem [resolvable:$true] %s139
          %145 = dma.hbm_to_vmem [thread:$0]  %s138, 1024, %s140, [#allocation7], 64, 64, 4
        $region16: #{tpu_custom_call.1} parent=11 // pred_fallthru
          _
      $region12: #{tpu_custom_call.1} parent=5 // pred_fallthru
        _
      %p146 = scmp.lt.s32.totalorder %s15, 2
      // Predicated region
      $region17: #{tpu_custom_call.1} parent=5 // pred_check
        %p147 = pneg %p146
      $region18: #{tpu_custom_call.1} parent=5 // pred_check_branch
        %149 = sbr.rel (%p147) target = $region20
      $region19: #{tpu_custom_call.1} parent=5 // pred_region
        // Predicated region
        $region21: #{tpu_custom_call.1} parent=19 // pred_check
          %p150 = pneg %p56
        $region22: #{tpu_custom_call.1} parent=19 // pred_check_branch
          %152 = sbr.rel (%p150) target = $region24
        $region23: #{tpu_custom_call.1} parent=19 // pred_region
          %s153 = sand.u32 %s46, 1
          %s154 = scalar_lea.sflag [#allocation4], %s153
          %s155 = sand.u32 %s46, 1
          %s156 = smul.addr %s155, 128
          %s157 = scalar_lea.vmem [#allocation3], %s156
          %s158 = smul.u32 16, %s22
          %s160 = ssub.s32 2048, 2048
          %161 = vsyncadd %s154, %s160
          %s162 = sadd.s32 %s24, %s158
          %s163 = smul.addr %s162, 128
          %s164 = scalar_lea.hbm %s0, %s163
          %s165 = sshll.u32 %s157, 4
          %s166 = int_to_ptr.vmem [resolvable:$true] %s165
          %171 = dma.hbm_to_vmem [thread:$0]  %s164, 2048, %s166, %s154, 128, 128, 8
        $region24: #{tpu_custom_call.1} parent=19 // pred_fallthru
          _
      $region20: #{tpu_custom_call.1} parent=5 // pred_fallthru
        _
      %p172 = scmp.le.s32.totalorder 1, %s15
      %p173 = scmp.lt.s32.totalorder %s15, 3
      %p174 = pnand %p172, %p173
      %p175 = pneg %p174
      // Predicated region
      $region25: #{tpu_custom_call.1} parent=5 // pred_check
        _
      $region26: #{tpu_custom_call.1} parent=5 // pred_check_branch
        %177 = sbr.rel (%p174) target = $region28
      $region27: #{tpu_custom_call.1} parent=5 // pred_region
        %s178 = ssub.s32 %s15, 1
        %s179 = sand.u32 %s49, 1
        %s180 = scalar_lea.sflag [#allocation4], %s179
        %s181 = sand.u32 %s49, 1
        %s182 = smul.addr %s181, 128
        %s183 = scalar_lea.vmem [#allocation3], %s182
        // Predicated region
        $region29: #{tpu_custom_call.1} parent=27 // pred_check
          %p184 = pneg %p62
        $region30: #{tpu_custom_call.1} parent=27 // pred_check_branch
          %186 = sbr.rel (%p184) target = $region32
        $region31: #{tpu_custom_call.1} parent=27 // pred_region
          %187 = dma.done %s180, 2048
        $region32: #{tpu_custom_call.1} parent=27 // pred_fallthru
          _
        // Predicated region
        $region33: #{tpu_custom_call.1} parent=27 // pred_check
          %p188 = pneg %p88
        $region34: #{tpu_custom_call.1} parent=27 // pred_check_branch
          %190 = sbr.rel (%p188) target = $region36
        $region35: #{tpu_custom_call.1} parent=27 // pred_region
          %191 = dma.done [#allocation7], 1024
        $region36: #{tpu_custom_call.1} parent=27 // pred_fallthru
          _
        %s192 = sand.u32 %s49, 1
        %s193 = scalar_lea.sflag [#allocation4], %s192
        %s194 = sand.u32 %s49, 1
        %s195 = smul.addr %s194, 128
        %s196 = scalar_lea.vmem [#allocation3], %s195
        %p197 = pneg %p62
        %p198 = pneg %p59
        %p199 = pneg %p88
        %p200 = pneg %p85
        %p201 = pneg %p116
        %p202 = pneg %p113
        %s203 = sand.u32 %s103, 1
        %s204 = scalar_lea.sflag [#allocation5], %s203
        %s205 = sand.u32 %s103, 1
        %s206 = smul.addr %s205, 64
        %s207 = scalar_lea.vmem [#allocation8], %s206
        %s208 = smul.u32 16, %s25
        %s209 = smul.u32 16, %s25
        %p211 = scmp.eq.s32.totalorder %s27, 0
        // Predicated region
        $region37: #{tpu_custom_call.1} parent=27 // pred_check
          %p212 = pneg %p211
        $region38: #{tpu_custom_call.1} parent=27 // pred_check_branch
          %214 = sbr.rel (%p212) target = $region40
        $region39: #{tpu_custom_call.1} parent=27 // pred_region
          %215 = vst [vmem:[#allocation2] sm:$0xff] 0.0
          %216 = vst [vmem:[#allocation2 + $0x8] sm:$0xff] 0.0
          %217 = vst [vmem:[#allocation2 + $0x10] sm:$0xff] 0.0
          %218 = vst [vmem:[#allocation2 + $0x18] sm:$0xff] 0.0
          %219 = vst [vmem:[#allocation2 + $0x20] sm:$0xff] 0.0
          %220 = vst [vmem:[#allocation2 + $0x28] sm:$0xff] 0.0
          %221 = vst [vmem:[#allocation2 + $0x30] sm:$0xff] 0.0
          %222 = vst [vmem:[#allocation2 + $0x38] sm:$0xff] 0.0
          %223 = vst [vmem:[#allocation2 + $0x40] sm:$0xff] 0.0
          %224 = vst [vmem:[#allocation2 + $0x48] sm:$0xff] 0.0
          %225 = vst [vmem:[#allocation2 + $0x50] sm:$0xff] 0.0
          %226 = vst [vmem:[#allocation2 + $0x58] sm:$0xff] 0.0
          %227 = vst [vmem:[#allocation2 + $0x60] sm:$0xff] 0.0
          %228 = vst [vmem:[#allocation2 + $0x68] sm:$0xff] 0.0
          %229 = vst [vmem:[#allocation2 + $0x70] sm:$0xff] 0.0
          %230 = vst [vmem:[#allocation2 + $0x78] sm:$0xff] 0.0
        $region40: #{tpu_custom_call.1} parent=27 // pred_fallthru
          _
        %v231 = vld [vmem:[%s183] sm:$0xff]
        %v232 = vld [vmem:[%s183 + $0x8] sm:$0xff]
        %v233 = vld [vmem:[%s183 + $0x10] sm:$0xff]
        %v234 = vld [vmem:[%s183 + $0x18] sm:$0xff]
        %v235 = vld [vmem:[%s183 + $0x20] sm:$0xff]
        %v236 = vld [vmem:[%s183 + $0x28] sm:$0xff]
        %v237 = vld [vmem:[%s183 + $0x30] sm:$0xff]
        %v238 = vld [vmem:[%s183 + $0x38] sm:$0xff]
        %v239 = vld [vmem:[%s183 + $0x40] sm:$0xff]
        %v240 = vld [vmem:[%s183 + $0x48] sm:$0xff]
        %v241 = vld [vmem:[%s183 + $0x50] sm:$0xff]
        %v242 = vld [vmem:[%s183 + $0x58] sm:$0xff]
        %v243 = vld [vmem:[%s183 + $0x60] sm:$0xff]
        %v244 = vld [vmem:[%s183 + $0x68] sm:$0xff]
        %v245 = vld [vmem:[%s183 + $0x70] sm:$0xff]
        %v246 = vld [vmem:[%s183 + $0x78] sm:$0xff]
        %v247 = vpack.c.bf16 %v232, %v231
        %v248 = vpack.c.bf16 %v234, %v233
        %v249 = vpack.c.bf16 %v236, %v235
        %v250 = vpack.c.bf16 %v238, %v237
        %v251 = vpack.c.bf16 %v240, %v239
        %v252 = vpack.c.bf16 %v242, %v241
        %v253 = vpack.c.bf16 %v244, %v243
        %v254 = vpack.c.bf16 %v246, %v245
        %s255 = smul.u32 %s27, 128
        %s256 = sshra.s32 %s255, 3
        %s257 = sand.u32 %s255, 7
        %s258 = smul.addr %s256, 4
        %s259 = scalar_lea.vmem [#allocation6], %s258
        %v260 = vld [vmem:[%s259] sm:$0xf]
        %v261 = vld [vmem:[%s259 + $0x4] sm:$0xf]
        %v262 = vld [vmem:[%s259 + $0x8] sm:$0xf]
        %v263 = vld [vmem:[%s259 + $0xc] sm:$0xf]
        %v264 = vld [vmem:[%s259 + $0x10] sm:$0xf]
        %v265 = vld [vmem:[%s259 + $0x14] sm:$0xf]
        %v266 = vld [vmem:[%s259 + $0x18] sm:$0xf]
        %v267 = vld [vmem:[%s259 + $0x1c] sm:$0xf]
        %v268 = vld [vmem:[%s259 + $0x20] sm:$0xf]
        %v269 = vld [vmem:[%s259 + $0x24] sm:$0xf]
        %v270 = vld [vmem:[%s259 + $0x28] sm:$0xf]
        %v271 = vld [vmem:[%s259 + $0x2c] sm:$0xf]
        %v272 = vld [vmem:[%s259 + $0x30] sm:$0xf]
        %v273 = vld [vmem:[%s259 + $0x34] sm:$0xf]
        %v274 = vld [vmem:[%s259 + $0x38] sm:$0xf]
        %v275 = vld [vmem:[%s259 + $0x3c] sm:$0xf]
        %v276 = vld [vmem:[#allocation2] sm:$0xff]
        %v277 = vld [vmem:[#allocation2 + $0x8] sm:$0xff]
        %v278 = vld [vmem:[#allocation2 + $0x10] sm:$0xff]
        %v279 = vld [vmem:[#allocation2 + $0x18] sm:$0xff]
        %v280 = vld [vmem:[#allocation2 + $0x20] sm:$0xff]
        %v281 = vld [vmem:[#allocation2 + $0x28] sm:$0xff]
        %v282 = vld [vmem:[#allocation2 + $0x30] sm:$0xff]
        %v283 = vld [vmem:[#allocation2 + $0x38] sm:$0xff]
        %v284 = vld [vmem:[#allocation2 + $0x40] sm:$0xff]
        %v285 = vld [vmem:[#allocation2 + $0x48] sm:$0xff]
        %v286 = vld [vmem:[#allocation2 + $0x50] sm:$0xff]
        %v287 = vld [vmem:[#allocation2 + $0x58] sm:$0xff]
        %v288 = vld [vmem:[#allocation2 + $0x60] sm:$0xff]
        %v289 = vld [vmem:[#allocation2 + $0x68] sm:$0xff]
        %v290 = vld [vmem:[#allocation2 + $0x70] sm:$0xff]
        %v291 = vld [vmem:[#allocation2 + $0x78] sm:$0xff]
        %v308 = vunpack.c.l.b16 %v260
        %v309 = vunpack.c.l.b16 %v261
        %v310 = vunpack.c.l.b16 %v262
        %v311 = vunpack.c.l.b16 %v263
        %v312 = vunpack.c.l.b16 %v264
        %v313 = vunpack.c.l.b16 %v265
        %v314 = vunpack.c.l.b16 %v266
        %v315 = vunpack.c.l.b16 %v267
        %v316 = vunpack.c.l.b16 %v268
        %v317 = vunpack.c.l.b16 %v269
        %v318 = vunpack.c.l.b16 %v270
        %v319 = vunpack.c.l.b16 %v271
        %v320 = vunpack.c.l.b16 %v272
        %v321 = vunpack.c.l.b16 %v273
        %v322 = vunpack.c.l.b16 %v274
        %v323 = vunpack.c.l.b16 %v275
        %v324 = vpack.c.b16 %v309, %v308
        %v325 = vpack.c.b16 %v311, %v310
        %v326 = vpack.c.b16 %v313, %v312
        %v327 = vpack.c.b16 %v315, %v314
        %v328 = vpack.c.b16 %v317, %v316
        %v329 = vpack.c.b16 %v319, %v318
        %v330 = vpack.c.b16 %v321, %v320
        %v331 = vpack.c.b16 %v323, %v322
        %340 = vmatprep.subr.bf16.mxu0 0
        %341 = vmatpush1.bf16.msra.mxu0 %v324
        %342 = vmatprep.subr.bf16.mxu0 0
        %343 = vmatpush1.bf16.msra.mxu0 %v325
        %344 = vmatprep.subr.bf16.mxu0 0
        %345 = vmatpush1.bf16.msra.mxu0 %v326
        %346 = vmatprep.subr.bf16.mxu0 0
        %347 = vmatpush1.bf16.msra.mxu0 %v327
        %348 = vmatprep.subr.bf16.mxu0 0
        %349 = vmatpush1.bf16.msra.mxu0 %v328
        %350 = vmatprep.subr.bf16.mxu0 0
        %351 = vmatpush1.bf16.msra.mxu0 %v329
        %352 = vmatprep.subr.bf16.mxu0 0
        %353 = vmatpush1.bf16.msra.mxu0 %v330
        %354 = vmatprep.subr.bf16.mxu0 0
        %355 = vmatpush1.bf16.msra.mxu0 %v331
        %356 = vmatprep.subr.bf16.mxu0 0
        %357 = vmatpush1.bf16.msra.mxu0 0
        %358 = vmatprep.subr.bf16.mxu0 0
        %359 = vmatpush1.bf16.msra.mxu0 0
        %360 = vmatprep.subr.bf16.mxu0 0
        %361 = vmatpush1.bf16.msra.mxu0 0
        %362 = vmatprep.subr.bf16.mxu0 0
        %363 = vmatpush1.bf16.msra.mxu0 0
        %364 = vmatprep.subr.bf16.mxu0 0
        %365 = vmatpush1.bf16.msra.mxu0 0
        %366 = vmatprep.subr.bf16.mxu0 0
        %367 = vmatpush1.bf16.msra.mxu0 0
        %368 = vmatprep.subr.bf16.mxu0 0
        %369 = vmatpush1.bf16.msra.mxu0 0
        %370 = vmatprep.subr.bf16.mxu0 0
        %371 = vmatpush1.bf16.msra.mxu0 0
        %372 = vmatprep.mubr.bf16.mxu0 0
        %373 = vmatmul.mubr.bf16.gmra.mrb[0].mxu0 %v247
        %v374 = vpop.f32.mrb[0].mxu0
        %v375 = vadd.f32 0.0, %v374
        %v376 = vpop.f32.mrb[0].mxu0
        %v377 = vpop.f32.mrb[0].mxu0
        %v378 = vadd.f32 0.0, %v377
        %v379 = vpop.f32.mrb[0].mxu0
        %380 = vmatprep.mubr.bf16.mxu0 0
        %381 = vmatmul.mubr.bf16.gmra.mrb[0].mxu0 %v248
        %v382 = vpop.f32.mrb[0].mxu0
        %v383 = vadd.f32 0.0, %v382
        %v384 = vpop.f32.mrb[0].mxu0
        %v385 = vpop.f32.mrb[0].mxu0
        %v386 = vadd.f32 0.0, %v385
        %v387 = vpop.f32.mrb[0].mxu0
        %388 = vmatprep.mubr.bf16.mxu0 0
        %389 = vmatmul.mubr.bf16.gmra.mrb[0].mxu0 %v249
        %v390 = vpop.f32.mrb[0].mxu0
        %v391 = vadd.f32 0.0, %v390
        %v392 = vpop.f32.mrb[0].mxu0
        %v393 = vpop.f32.mrb[0].mxu0
        %v394 = vadd.f32 0.0, %v393
        %v395 = vpop.f32.mrb[0].mxu0
        %396 = vmatprep.mubr.bf16.mxu0 0
        %397 = vmatmul.mubr.bf16.gmra.mrb[0].mxu0 %v250
        %v398 = vpop.f32.mrb[0].mxu0
        %v399 = vadd.f32 0.0, %v398
        %v400 = vpop.f32.mrb[0].mxu0
        %v401 = vpop.f32.mrb[0].mxu0
        %v402 = vadd.f32 0.0, %v401
        %v403 = vpop.f32.mrb[0].mxu0
        %404 = vmatprep.mubr.bf16.mxu0 0
        %405 = vmatmul.mubr.bf16.gmra.mrb[0].mxu0 %v251
        %v406 = vpop.f32.mrb[0].mxu0
        %v407 = vadd.f32 0.0, %v406
        %v408 = vpop.f32.mrb[0].mxu0
        %v409 = vpop.f32.mrb[0].mxu0
        %v410 = vadd.f32 0.0, %v409
        %v411 = vpop.f32.mrb[0].mxu0
        %412 = vmatprep.mubr.bf16.mxu0 0
        %413 = vmatmul.mubr.bf16.gmra.mrb[0].mxu0 %v252
        %v414 = vpop.f32.mrb[0].mxu0
        %v415 = vadd.f32 0.0, %v414
        %v416 = vpop.f32.mrb[0].mxu0
        %v417 = vpop.f32.mrb[0].mxu0
        %v418 = vadd.f32 0.0, %v417
        %v419 = vpop.f32.mrb[0].mxu0
        %420 = vmatprep.mubr.bf16.mxu0 0
        %421 = vmatmul.mubr.bf16.gmra.mrb[0].mxu0 %v253
        %v422 = vpop.f32.mrb[0].mxu0
        %v423 = vadd.f32 0.0, %v422
        %v424 = vpop.f32.mrb[0].mxu0
        %v425 = vpop.f32.mrb[0].mxu0
        %v426 = vadd.f32 0.0, %v425
        %v427 = vpop.f32.mrb[0].mxu0
        %428 = vmatprep.mubr.bf16.mxu0 0
        %429 = vmatmul.mubr.bf16.gmra.mrb[0].mxu0 %v254
        %v430 = vpop.f32.mrb[0].mxu0
        %v431 = vadd.f32 0.0, %v430
        %v432 = vpop.f32.mrb[0].mxu0
        %v433 = vpop.f32.mrb[0].mxu0
        %v434 = vadd.f32 0.0, %v433
        %v435 = vpop.f32.mrb[0].mxu0
        %436 = vdwg.mxu0
        %v437 = vadd.f32 %v276, %v375
        %v438 = vadd.f32 %v277, %v378
        %v439 = vadd.f32 %v278, %v383
        %v440 = vadd.f32 %v279, %v386
        %v441 = vadd.f32 %v280, %v391
        %v442 = vadd.f32 %v281, %v394
        %v443 = vadd.f32 %v282, %v399
        %v444 = vadd.f32 %v283, %v402
        %v445 = vadd.f32 %v284, %v407
        %v446 = vadd.f32 %v285, %v410
        %v447 = vadd.f32 %v286, %v415
        %v448 = vadd.f32 %v287, %v418
        %v449 = vadd.f32 %v288, %v423
        %v450 = vadd.f32 %v289, %v426
        %v451 = vadd.f32 %v290, %v431
        %v452 = vadd.f32 %v291, %v434
        %453 = vst [vmem:[#allocation2] sm:$0xff] %v437
        %454 = vst [vmem:[#allocation2 + $0x8] sm:$0xff] %v438
        %455 = vst [vmem:[#allocation2 + $0x10] sm:$0xff] %v439
        %456 = vst [vmem:[#allocation2 + $0x18] sm:$0xff] %v440
        %457 = vst [vmem:[#allocation2 + $0x20] sm:$0xff] %v441
        %458 = vst [vmem:[#allocation2 + $0x28] sm:$0xff] %v442
        %459 = vst [vmem:[#allocation2 + $0x30] sm:$0xff] %v443
        %460 = vst [vmem:[#allocation2 + $0x38] sm:$0xff] %v444
        %461 = vst [vmem:[#allocation2 + $0x40] sm:$0xff] %v445
        %462 = vst [vmem:[#allocation2 + $0x48] sm:$0xff] %v446
        %463 = vst [vmem:[#allocation2 + $0x50] sm:$0xff] %v447
        %464 = vst [vmem:[#allocation2 + $0x58] sm:$0xff] %v448
        %465 = vst [vmem:[#allocation2 + $0x60] sm:$0xff] %v449
        %466 = vst [vmem:[#allocation2 + $0x68] sm:$0xff] %v450
        %467 = vst [vmem:[#allocation2 + $0x70] sm:$0xff] %v451
        %468 = vst [vmem:[#allocation2 + $0x78] sm:$0xff] %v452
        // Predicated region
        $region41: #{tpu_custom_call.1} parent=27 // pred_check
          %p469 = pneg %p211
        $region42: #{tpu_custom_call.1} parent=27 // pred_check_branch
          %471 = sbr.rel (%p469) target = $region44
        $region43: #{tpu_custom_call.1} parent=27 // pred_region
          %v472 = vld [vmem:[#allocation2] sm:$0xff]
          %v473 = vld [vmem:[#allocation2 + $0x8] sm:$0xff]
          %v474 = vld [vmem:[#allocation2 + $0x10] sm:$0xff]
          %v475 = vld [vmem:[#allocation2 + $0x18] sm:$0xff]
          %v476 = vld [vmem:[#allocation2 + $0x20] sm:$0xff]
          %v477 = vld [vmem:[#allocation2 + $0x28] sm:$0xff]
          %v478 = vld [vmem:[#allocation2 + $0x30] sm:$0xff]
          %v479 = vld [vmem:[#allocation2 + $0x38] sm:$0xff]
          %v480 = vld [vmem:[#allocation2 + $0x40] sm:$0xff]
          %v481 = vld [vmem:[#allocation2 + $0x48] sm:$0xff]
          %v482 = vld [vmem:[#allocation2 + $0x50] sm:$0xff]
          %v483 = vld [vmem:[#allocation2 + $0x58] sm:$0xff]
          %v484 = vld [vmem:[#allocation2 + $0x60] sm:$0xff]
          %v485 = vld [vmem:[#allocation2 + $0x68] sm:$0xff]
          %v486 = vld [vmem:[#allocation2 + $0x70] sm:$0xff]
          %v487 = vld [vmem:[#allocation2 + $0x78] sm:$0xff]
          %v488 = vpack.c.bf16 %v473, %v472
          %v489 = vpack.c.bf16 %v475, %v474
          %v490 = vpack.c.bf16 %v477, %v476
          %v491 = vpack.c.bf16 %v479, %v478
          %v492 = vpack.c.bf16 %v481, %v480
          %v493 = vpack.c.bf16 %v483, %v482
          %v494 = vpack.c.bf16 %v485, %v484
          %v495 = vpack.c.bf16 %v487, %v486
          %v504 = vunpack.c.l.b16 %v488
          %v505 = vunpack.c.h.b16 %v488
          %v506 = vunpack.c.l.b16 %v489
          %v507 = vunpack.c.h.b16 %v489
          %v508 = vunpack.c.l.b16 %v490
          %v509 = vunpack.c.h.b16 %v490
          %v510 = vunpack.c.l.b16 %v491
          %v511 = vunpack.c.h.b16 %v491
          %v512 = vunpack.c.l.b16 %v492
          %v513 = vunpack.c.h.b16 %v492
          %v514 = vunpack.c.l.b16 %v493
          %v515 = vunpack.c.h.b16 %v493
          %v516 = vunpack.c.l.b16 %v494
          %v517 = vunpack.c.h.b16 %v494
          %v518 = vunpack.c.l.b16 %v495
          %v519 = vunpack.c.h.b16 %v495
          %v520 = vpack.c.b16 %v504, %v504
          %v521 = vpack.c.b16 %v505, %v505
          %v522 = vpack.c.b16 %v506, %v506
          %v523 = vpack.c.b16 %v507, %v507
          %v524 = vpack.c.b16 %v508, %v508
          %v525 = vpack.c.b16 %v509, %v509
          %v526 = vpack.c.b16 %v510, %v510
          %v527 = vpack.c.b16 %v511, %v511
          %v528 = vpack.c.b16 %v512, %v512
          %v529 = vpack.c.b16 %v513, %v513
          %v530 = vpack.c.b16 %v514, %v514
          %v531 = vpack.c.b16 %v515, %v515
          %v532 = vpack.c.b16 %v516, %v516
          %v533 = vpack.c.b16 %v517, %v517
          %v534 = vpack.c.b16 %v518, %v518
          %v535 = vpack.c.b16 %v519, %v519
          %552 = vst [vmem:[%s207] sm:$0xf] %v520
          %553 = vst [vmem:[%s207 + $0x4] sm:$0xf] %v521
          %554 = vst [vmem:[%s207 + $0x8] sm:$0xf] %v522
          %555 = vst [vmem:[%s207 + $0xc] sm:$0xf] %v523
          %556 = vst [vmem:[%s207 + $0x10] sm:$0xf] %v524
          %557 = vst [vmem:[%s207 + $0x14] sm:$0xf] %v525
          %558 = vst [vmem:[%s207 + $0x18] sm:$0xf] %v526
          %559 = vst [vmem:[%s207 + $0x1c] sm:$0xf] %v527
          %560 = vst [vmem:[%s207 + $0x20] sm:$0xf] %v528
          %561 = vst [vmem:[%s207 + $0x24] sm:$0xf] %v529
          %562 = vst [vmem:[%s207 + $0x28] sm:$0xf] %v530
          %563 = vst [vmem:[%s207 + $0x2c] sm:$0xf] %v531
          %564 = vst [vmem:[%s207 + $0x30] sm:$0xf] %v532
          %565 = vst [vmem:[%s207 + $0x34] sm:$0xf] %v533
          %566 = vst [vmem:[%s207 + $0x38] sm:$0xf] %v534
          %567 = vst [vmem:[%s207 + $0x3c] sm:$0xf] %v535
        $region44: #{tpu_custom_call.1} parent=27 // pred_fallthru
          _
        %s568 = sand.u32 %s103, 1
        %s569 = scalar_lea.sflag [#allocation5], %s568
        %s570 = sand.u32 %s103, 1
        %s571 = smul.addr %s570, 64
        %s572 = scalar_lea.vmem [#allocation8], %s571
        // Predicated region
        $region45: #{tpu_custom_call.1} parent=27 // pred_check
          %p573 = pneg %p113
        $region46: #{tpu_custom_call.1} parent=27 // pred_check_branch
          %575 = sbr.rel (%p573) target = $region48
        $region47: #{tpu_custom_call.1} parent=27 // pred_region
          %s576 = smul.u32 16, %s25
          %s578 = ssub.s32 1024, 1024
          %579 = vsyncadd %s569, %s578
          %s580 = sadd.s32 %s26, %s576
          %s581 = smul.addr %s580, 64
          %s582 = scalar_lea.hbm %s2, %s581
          %s583 = sshll.u32 %s572, 4
          %s584 = int_to_ptr.vmem [resolvable:$true] %s583
          %589 = dma.vmem_to_hbm [thread:$0]  %s584, 1024, %s582, %s569, 64, 64, 4
        $region48: #{tpu_custom_call.1} parent=27 // pred_fallthru
          _
      $region28: #{tpu_custom_call.1} parent=5 // pred_fallthru
        _
      %p590 = scmp.le.s32.totalorder 2, %s15
      // Predicated region
      $region49: #{tpu_custom_call.1} parent=5 // pred_check
        %p591 = pneg %p590
      $region50: #{tpu_custom_call.1} parent=5 // pred_check_branch
        %593 = sbr.rel (%p591) target = $region52
      $region51: #{tpu_custom_call.1} parent=5 // pred_region
        %s594 = ssub.s32 %s15, 2
        // Predicated region
        $region53: #{tpu_custom_call.1} parent=51 // pred_check
          %p595 = pneg %p119
        $region54: #{tpu_custom_call.1} parent=51 // pred_check_branch
          %597 = sbr.rel (%p595) target = $region56
        $region55: #{tpu_custom_call.1} parent=51 // pred_region
          %s598 = sand.u32 %s104, 1
          %s599 = scalar_lea.sflag [#allocation5], %s598
          %s600 = sand.u32 %s104, 1
          %s601 = smul.addr %s600, 64
          %s602 = scalar_lea.vmem [#allocation8], %s601
          %603 = dma.done %s599, 1024
        $region56: #{tpu_custom_call.1} parent=51 // pred_fallthru
          _
      $region52: #{tpu_custom_call.1} parent=5 // pred_fallthru
        _
    $region6: #{tpu_custom_call.1} parent=1 // loop_footer
      %s19 = sadd.s32 1, %s15
    $region7: #{tpu_custom_call.1} parent=1 // loop_footer_branch
      %14 = sbr.rel target = $region3
    $region8: #{tpu_custom_call.1} parent=1 // loop_exit
      _
    %604 = vsyncpa [#allocation4], 1
    %s605 = scalar_lea.sflag [#allocation4], 1
    %606 = vsyncpa %s605, 1
    %607 = vsyncpa [#allocation7], 1
    %608 = vsyncpa [#allocation5], 1
    %s609 = scalar_lea.sflag [#allocation5], 1
    %610 = vsyncpa %s609, 1

</llo_original>
